<compile_context>
chip_gen: v7x
topology: tpu7x:2x2x1
jax: 0.10.0
libtpu: 0.0.40
codegen_flags: <defaults>
</compile_context>

<pallas_src>
import functools

import jax
import jax.numpy as jnp
from jax.experimental import pallas as pl
from jax.experimental.pallas import tpu as pltpu


def _round_up(x, m):
    return (x + m - 1) // m * m


def _dice_ce_kernel(logits_ref, labels_ref, out_ref, acc_ref, *, num_classes):
    """One (batch, pixel-tile) step.

    logits_ref: (1, C, TILE_G, 8, 128) f32
    labels_ref: (1, 1, TILE_G, 8, 128) i32   (-1 marks padded pixels)
    out_ref   : (1, NACC_PAD, 128) f32       (resident across the tile axis)
    acc_ref   : (NACC_PAD, 8, 128) f32 VMEM scratch accumulators
                rows 3c / 3c+1 / 3c+2 = tp / sum_p / sum_y for class c,
                row 3C = cross-entropy partial.
    """
    C = num_classes
    n = pl.program_id(1)

    @pl.when(n == 0)
    def _init():
        acc_ref[...] = jnp.zeros_like(acc_ref)

    lbl = labels_ref[0, 0]                            # (G, 8, 128) i32
    valid = (lbl >= 0).astype(jnp.float32)            # 0 for padded pixels

    x = [logits_ref[0, c] for c in range(C)]          # each (G, 8, 128) f32

    # channel max — unrolled elementwise maxima on full vregs (no XLU)
    m = x[0]
    for c in range(1, C):
        m = jnp.maximum(m, x[c])

    # exp(x - m) and softmax denominator
    e = []
    s = None
    for c in range(C):
        ec = jnp.exp(x[c] - m)
        e.append(ec)
        s = ec if s is None else s + ec

    # one reciprocal per pixel (EUP); masking r zeroes softmax at padded pixels
    r = pl.reciprocal(s) * valid
    log_s = jnp.log(s)

    # per-pixel CE contribution: valid*(m + log s) - logit_at_target
    ce_part = valid * (m + log_s)

    def fold(v):  # (G, 8, 128) -> (8, 128): leading-dim reduce = elementwise adds
        return jnp.sum(v, axis=0)

    for c in range(C):
        yc = (lbl == c).astype(jnp.float32)           # one-hot slice (no iota scatter)
        pc = e[c] * r                                 # softmax prob of class c
        acc_ref[3 * c + 0] += fold(pc * yc)           # tp partial
        acc_ref[3 * c + 1] += fold(pc)                # sum_p partial
        acc_ref[3 * c + 2] += fold(yc)                # sum_y partial
        ce_part = ce_part - x[c] * yc
    acc_ref[3 * C] += fold(ce_part)                   # CE partial

    @pl.when(n == pl.num_programs(1) - 1)
    def _finalize():
        # single cross-sublane reduce per batch element; lane reduce in JAX tail
        out_ref[0] = jnp.sum(acc_ref[...], axis=1)    # (NACC_PAD, 128)


def dc_and_ce_loss(net_output, target, *, batch_dice=True, do_bg=False,
                   smooth=1e-5, weight_ce=1.0, weight_dice=1.0,
                   tile_bytes=2 * 1024 * 1024):
    """DC_and_CE_loss(soft_dice_kwargs={'batch_dice':batch_dice,'smooth':smooth,
    'do_bg':do_bg}, ce_kwargs={}, aggregate='sum', square_dice=False)."""
    # TODO(synk): loss_mask and square_dice=True variants of the module are not
    # implemented (the default DC_and_CE_loss forward path does not use them).
    B, C, H, W = net_output.shape
    N = H * W
    GROUP = 8 * 128                       # pixels per (8,128) vreg group
    NACC = 3 * C + 1
    NACC_PAD = _round_up(NACC, 8)

    # pick groups-per-tile so one logits block is ~tile_bytes; 2 MiB keeps the
    # double-buffered (C+1)-channel tiles well under the 32 MiB scoped-VMEM
    # default and v7x's 64 MiB physical VMEM while amortizing per-step overhead.
    ng = _round_up(N, GROUP) // GROUP
    tile_g = max(1, min(ng, tile_bytes // (C * GROUP * 4)))
    ng_pad = _round_up(ng, tile_g)
    n_pad = ng_pad * GROUP
    num_tiles = ng_pad // tile_g

    logits = net_output.reshape(B, C, N).astype(jnp.float32)
    labels = target.reshape(B, N).astype(jnp.int32)
    if n_pad != N:
        logits = jnp.pad(logits, ((0, 0), (0, 0), (0, n_pad - N)))
        # label -1 marks padded pixels; masked inside the kernel
        labels = jnp.pad(labels, ((0, 0), (0, n_pad - N)), constant_values=-1)
    logits = logits.reshape(B, C, ng_pad, 8, 128)
    labels = labels.reshape(B, 1, ng_pad, 8, 128)

    kernel = functools.partial(_dice_ce_kernel, num_classes=C)

    cost = pl.CostEstimate(
        flops=int(B * n_pad * (8 * C + 8)),
        transcendentals=int(B * n_pad * (C + 2)),
        bytes_accessed=int(B * (C + 1) * n_pad * 4 + B * NACC_PAD * 128 * 4),
    )

    out = pl.pallas_call(
        kernel,
        out_shape=jax.ShapeDtypeStruct((B, NACC_PAD, 128), jnp.float32),
        grid_spec=pltpu.PrefetchScalarGridSpec(
            num_scalar_prefetch=0,
            grid=(B, num_tiles),
            in_specs=[
                pl.BlockSpec((1, C, tile_g, 8, 128),
                             lambda b, n: (b, 0, n, 0, 0)),
                pl.BlockSpec((1, 1, tile_g, 8, 128),
                             lambda b, n: (b, 0, n, 0, 0)),
            ],
            out_specs=pl.BlockSpec((1, NACC_PAD, 128),
                                   lambda b, n: (b, 0, 0)),
            scratch_shapes=[pltpu.VMEM((NACC_PAD, 8, 128), jnp.float32)],
        ),
        compiler_params=pltpu.CompilerParams(
            dimension_semantics=("parallel", "arbitrary"),
            vmem_limit_bytes=32 * 1024 * 1024,
        ),
        cost_estimate=cost,
    )(logits, labels)

    # JAX tail: final lane reduce + scalar glue
    sums = jnp.sum(out, axis=-1)               # (B, NACC_PAD)
    tp = sums[:, 0:3 * C:3]                    # (B, C)
    sum_p = sums[:, 1:3 * C:3]
    sum_y = sums[:, 2:3 * C:3]
    ce_sum = sums[:, 3 * C]                    # (B,)
    fp = sum_p - tp
    fn = sum_y - tp

    # SoftDiceLoss tail
    if batch_dice:
        tp = tp.sum(axis=0)
        fp = fp.sum(axis=0)
        fn = fn.sum(axis=0)
    dc = (2.0 * tp + smooth) / (2.0 * tp + fp + fn + smooth)
    if not do_bg:
        dc = dc[1:] if batch_dice else dc[:, 1:]
    dc_loss = -jnp.mean(dc)

    # CrossentropyND tail: mean over all B*H*W (unpadded) pixels.
    # (labels are assumed to be valid class indices; ignore_index not modeled)
    ce_loss = jnp.sum(ce_sum) / float(B * N)

    # aggregate == 'sum'
    return weight_ce * ce_loss + weight_dice * dc_loss


def _reference(net_output, target, *, batch_dice=True, do_bg=False,
               smooth=1e-5, weight_ce=1.0, weight_dice=1.0):
    """Pure-JAX reference reproducing the PyTorch module semantics."""
    B, C, H, W = net_output.shape
    x = jax.nn.softmax(net_output.astype(jnp.float32), axis=1)
    y = jax.nn.one_hot(target.reshape(B, H, W), C, axis=1, dtype=jnp.float32)
    axes = (0, 2, 3) if batch_dice else (2, 3)
    tp = jnp.sum(x * y, axes)
    fp = jnp.sum(x * (1.0 - y), axes)
    fn = jnp.sum((1.0 - x) * y, axes)
    dc = (2.0 * tp + smooth) / (2.0 * tp + fp + fn + smooth)
    if not do_bg:
        dc = dc[1:] if batch_dice else dc[:, 1:]
    dc_loss = -jnp.mean(dc)
    logp = jax.nn.log_softmax(net_output.astype(jnp.float32), axis=1)
    ce_loss = -jnp.mean(jnp.sum(logp * y, axis=1))
    return weight_ce * ce_loss + weight_dice * dc_loss


if __name__ == "__main__":
    B, C, H, W = 2, 4, 16, 16
    key = jax.random.PRNGKey(0)
    k_logits, k_labels = jax.random.split(key)
    net_output = jax.random.normal(k_logits, (B, C, H, W), dtype=jnp.float32)
    target = jax.random.randint(k_labels, (B, 1, H, W), 0, C, dtype=jnp.int32)

    # nnU-Net-style config: batch dice, no background, small smooth.
    cfg = dict(batch_dice=True, do_bg=False, smooth=1e-5,
               weight_ce=1.0, weight_dice=1.0)

    loss = dc_and_ce_loss(net_output, target, **cfg)
    loss = jax.block_until_ready(loss)

    ref = _reference(net_output, target, **cfg)
    assert jnp.allclose(loss, ref, atol=1e-5, rtol=1e-5), (loss, ref)

    print("KERNEL_OK")
</pallas_src>

<mosaic_0001>
module attributes {stable_mosaic.version = 11 : i64} {
  func.func @_dice_ce_kernel(%arg0: i32, %arg1: i32, %arg2: memref<1x4x1x8x128xf32, #tpu.memory_space<vmem>>, %arg3: memref<1x1x1x8x128xi32, #tpu.memory_space<vmem>>, %arg4: memref<1x16x128xf32, #tpu.memory_space<vmem>>, %arg5: memref<16x8x128xf32, #tpu.memory_space<vmem>>) attributes {dimension_semantics = [#tpu.dimension_semantics<parallel>, #tpu.dimension_semantics<arbitrary>], iteration_bounds = array<i64: 2, 1>, scalar_prefetch = 0 : i64, scratch_operands = 1 : i64, tpu.core_type = #tpu.core_type<tc>, window_params = [{transform_indices = @transform_0, window_bounds = array<i64: 1, 4, 1, 8, 128>}, {transform_indices = @transform_1, window_bounds = array<i64: 1, 1, 1, 8, 128>}, {transform_indices = @transform_2, window_bounds = array<i64: 1, 16, 128>}]} {
    %c0_i32 = arith.constant 0 : i32
    %0 = arith.cmpi eq, %arg1, %c0_i32 : i32
    %1 = arith.extui %0 : i1 to i32
    %c0_i32_0 = arith.constant 0 : i32
    %2 = arith.cmpi ne, %1, %c0_i32_0 : i32
    scf.if %2 {
      %cst_107 = arith.constant 0.000000e+00 : f32
      %162 = vector.broadcast %cst_107 : f32 to vector<16x8x128xf32>
      %c0_108 = arith.constant 0 : index
      %c0_109 = arith.constant 0 : index
      %c0_110 = arith.constant 0 : index
      %163 = vector.load %arg5[%c0_108, %c0_109, %c0_110] : memref<16x8x128xf32, #tpu.memory_space<vmem>>, vector<16x8x128xf32>
      tpu.vector_store %arg5[%c0_108, %c0_109, %c0_110], %162 {strides = array<i32>} : memref<16x8x128xf32, #tpu.memory_space<vmem>>, vector<16x8x128xf32>,
    } else {
    }
    %c0 = arith.constant 0 : index
    %c0_1 = arith.constant 0 : index
    %c0_2 = arith.constant 0 : index
    %c0_3 = arith.constant 0 : index
    %c0_4 = arith.constant 0 : index
    %3 = vector.load %arg3[%c0, %c0_1, %c0_2, %c0_3, %c0_4] : memref<1x1x1x8x128xi32, #tpu.memory_space<vmem>>, vector<1x1x1x8x128xi32>
    %4 = vector.shape_cast %3 : vector<1x1x1x8x128xi32> to vector<1x8x128xi32>
    %c0_i32_5 = arith.constant 0 : i32
    %5 = vector.broadcast %c0_i32_5 : i32 to vector<1x8x128xi32>
    %6 = arith.cmpi sge, %4, %5 : vector<1x8x128xi32>
    %7 = arith.extui %6 : vector<1x8x128xi1> to vector<1x8x128xi32>
    %8 = arith.sitofp %7 : vector<1x8x128xi32> to vector<1x8x128xf32>
    %c0_6 = arith.constant 0 : index
    %c0_7 = arith.constant 0 : index
    %c0_8 = arith.constant 0 : index
    %c0_9 = arith.constant 0 : index
    %c0_10 = arith.constant 0 : index
    %9 = vector.load %arg2[%c0_6, %c0_7, %c0_8, %c0_9, %c0_10] : memref<1x4x1x8x128xf32, #tpu.memory_space<vmem>>, vector<1x1x1x8x128xf32>
    %10 = vector.shape_cast %9 : vector<1x1x1x8x128xf32> to vector<1x8x128xf32>
    %c0_11 = arith.constant 0 : index
    %c1 = arith.constant 1 : index
    %c0_12 = arith.constant 0 : index
    %c0_13 = arith.constant 0 : index
    %c0_14 = arith.constant 0 : index
    %11 = vector.load %arg2[%c0_11, %c1, %c0_12, %c0_13, %c0_14] : memref<1x4x1x8x128xf32, #tpu.memory_space<vmem>>, vector<1x1x1x8x128xf32>
    %12 = vector.shape_cast %11 : vector<1x1x1x8x128xf32> to vector<1x8x128xf32>
    %c0_15 = arith.constant 0 : index
    %c2 = arith.constant 2 : index
    %c0_16 = arith.constant 0 : index
    %c0_17 = arith.constant 0 : index
    %c0_18 = arith.constant 0 : index
    %13 = vector.load %arg2[%c0_15, %c2, %c0_16, %c0_17, %c0_18] : memref<1x4x1x8x128xf32, #tpu.memory_space<vmem>>, vector<1x1x1x8x128xf32>
    %14 = vector.shape_cast %13 : vector<1x1x1x8x128xf32> to vector<1x8x128xf32>
    %c0_19 = arith.constant 0 : index
    %c3 = arith.constant 3 : index
    %c0_20 = arith.constant 0 : index
    %c0_21 = arith.constant 0 : index
    %c0_22 = arith.constant 0 : index
    %15 = vector.load %arg2[%c0_19, %c3, %c0_20, %c0_21, %c0_22] : memref<1x4x1x8x128xf32, #tpu.memory_space<vmem>>, vector<1x1x1x8x128xf32>
    %16 = vector.shape_cast %15 : vector<1x1x1x8x128xf32> to vector<1x8x128xf32>
    %17 = arith.maximumf %10, %12 : vector<1x8x128xf32>
    %18 = arith.maximumf %17, %14 : vector<1x8x128xf32>
    %19 = arith.maximumf %18, %16 : vector<1x8x128xf32>
    %20 = arith.subf %10, %19 : vector<1x8x128xf32>
    %21 = math.exp %20 : vector<1x8x128xf32>
    %22 = arith.subf %12, %19 : vector<1x8x128xf32>
    %23 = math.exp %22 : vector<1x8x128xf32>
    %24 = arith.addf %21, %23 : vector<1x8x128xf32>
    %25 = arith.subf %14, %19 : vector<1x8x128xf32>
    %26 = math.exp %25 : vector<1x8x128xf32>
    %27 = arith.addf %24, %26 : vector<1x8x128xf32>
    %28 = arith.subf %16, %19 : vector<1x8x128xf32>
    %29 = math.exp %28 : vector<1x8x128xf32>
    %30 = arith.addf %27, %29 : vector<1x8x128xf32>
    %31 = tpu.reciprocal %30 : vector<1x8x128xf32> -> vector<1x8x128xf32>
    %32 = arith.mulf %31, %8 : vector<1x8x128xf32>
    %33 = math.log %30 : vector<1x8x128xf32>
    %34 = arith.addf %19, %33 : vector<1x8x128xf32>
    %35 = arith.mulf %8, %34 : vector<1x8x128xf32>
    %c0_i32_23 = arith.constant 0 : i32
    %36 = vector.broadcast %c0_i32_23 : i32 to vector<1x8x128xi32>
    %37 = arith.cmpi eq, %4, %36 : vector<1x8x128xi32>
    %38 = arith.extui %37 : vector<1x8x128xi1> to vector<1x8x128xi32>
    %39 = arith.sitofp %38 : vector<1x8x128xi32> to vector<1x8x128xf32>
    %40 = arith.mulf %21, %32 : vector<1x8x128xf32>
    %c0_24 = arith.constant 0 : index
    %c0_25 = arith.constant 0 : index
    %c0_26 = arith.constant 0 : index
    %41 = vector.load %arg5[%c0_24, %c0_25, %c0_26] : memref<16x8x128xf32, #tpu.memory_space<vmem>>, vector<1x8x128xf32>
    %42 = vector.shape_cast %41 : vector<1x8x128xf32> to vector<8x128xf32>
    %43 = arith.mulf %40, %39 : vector<1x8x128xf32>
    %cst = arith.constant dense<0.000000e+00> : vector<8x128xf32>
    %44 = vector.multi_reduction <add>, %43, %cst [0] : vector<1x8x128xf32> to vector<8x128xf32>
    %45 = arith.addf %42, %44 : vector<8x128xf32>
    %c0_27 = arith.constant 0 : index
    %c0_28 = arith.constant 0 : index
    %c0_29 = arith.constant 0 : index
    %46 = vector.load %arg5[%c0_27, %c0_28, %c0_29] : memref<16x8x128xf32, #tpu.memory_space<vmem>>, vector<1x8x128xf32>
    %47 = vector.shape_cast %46 : vector<1x8x128xf32> to vector<8x128xf32>
    %48 = vector.shape_cast %45 : vector<8x128xf32> to vector<1x8x128xf32>
    tpu.vector_store %arg5[%c0_27, %c0_28, %c0_29], %48 {strides = array<i32>} : memref<16x8x128xf32, #tpu.memory_space<vmem>>, vector<1x8x128xf32>,
    %c1_30 = arith.constant 1 : index
    %c0_31 = arith.constant 0 : index
    %c0_32 = arith.constant 0 : index
    %49 = vector.load %arg5[%c1_30, %c0_31, %c0_32] : memref<16x8x128xf32, #tpu.memory_space<vmem>>, vector<1x8x128xf32>
    %50 = vector.shape_cast %49 : vector<1x8x128xf32> to vector<8x128xf32>
    %cst_33 = arith.constant dense<0.000000e+00> : vector<8x128xf32>
    %51 = vector.multi_reduction <add>, %40, %cst_33 [0] : vector<1x8x128xf32> to vector<8x128xf32>
    %52 = arith.addf %50, %51 : vector<8x128xf32>
    %c1_34 = arith.constant 1 : index
    %c0_35 = arith.constant 0 : index
    %c0_36 = arith.constant 0 : index
    %53 = vector.load %arg5[%c1_34, %c0_35, %c0_36] : memref<16x8x128xf32, #tpu.memory_space<vmem>>, vector<1x8x128xf32>
    %54 = vector.shape_cast %53 : vector<1x8x128xf32> to vector<8x128xf32>
    %55 = vector.shape_cast %52 : vector<8x128xf32> to vector<1x8x128xf32>
    tpu.vector_store %arg5[%c1_34, %c0_35, %c0_36], %55 {strides = array<i32>} : memref<16x8x128xf32, #tpu.memory_space<vmem>>, vector<1x8x128xf32>,
    %c2_37 = arith.constant 2 : index
    %c0_38 = arith.constant 0 : index
    %c0_39 = arith.constant 0 : index
    %56 = vector.load %arg5[%c2_37, %c0_38, %c0_39] : memref<16x8x128xf32, #tpu.memory_space<vmem>>, vector<1x8x128xf32>
    %57 = vector.shape_cast %56 : vector<1x8x128xf32> to vector<8x128xf32>
    %cst_40 = arith.constant dense<0.000000e+00> : vector<8x128xf32>
    %58 = vector.multi_reduction <add>, %39, %cst_40 [0] : vector<1x8x128xf32> to vector<8x128xf32>
    %59 = arith.addf %57, %58 : vector<8x128xf32>
    %c2_41 = arith.constant 2 : index
    %c0_42 = arith.constant 0 : index
    %c0_43 = arith.constant 0 : index
    %60 = vector.load %arg5[%c2_41, %c0_42, %c0_43] : memref<16x8x128xf32, #tpu.memory_space<vmem>>, vector<1x8x128xf32>
    %61 = vector.shape_cast %60 : vector<1x8x128xf32> to vector<8x128xf32>
    %62 = vector.shape_cast %59 : vector<8x128xf32> to vector<1x8x128xf32>
    tpu.vector_store %arg5[%c2_41, %c0_42, %c0_43], %62 {strides = array<i32>} : memref<16x8x128xf32, #tpu.memory_space<vmem>>, vector<1x8x128xf32>,
    %63 = arith.mulf %10, %39 : vector<1x8x128xf32>
    %64 = arith.subf %35, %63 : vector<1x8x128xf32>
    %c1_i32 = arith.constant 1 : i32
    %65 = vector.broadcast %c1_i32 : i32 to vector<1x8x128xi32>
    %66 = arith.cmpi eq, %4, %65 : vector<1x8x128xi32>
    %67 = arith.extui %66 : vector<1x8x128xi1> to vector<1x8x128xi32>
    %68 = arith.sitofp %67 : vector<1x8x128xi32> to vector<1x8x128xf32>
    %69 = arith.mulf %23, %32 : vector<1x8x128xf32>
    %c3_44 = arith.constant 3 : index
    %c0_45 = arith.constant 0 : index
    %c0_46 = arith.constant 0 : index
    %70 = vector.load %arg5[%c3_44, %c0_45, %c0_46] : memref<16x8x128xf32, #tpu.memory_space<vmem>>, vector<1x8x128xf32>
    %71 = vector.shape_cast %70 : vector<1x8x128xf32> to vector<8x128xf32>
    %72 = arith.mulf %69, %68 : vector<1x8x128xf32>
    %cst_47 = arith.constant dense<0.000000e+00> : vector<8x128xf32>
    %73 = vector.multi_reduction <add>, %72, %cst_47 [0] : vector<1x8x128xf32> to vector<8x128xf32>
    %74 = arith.addf %71, %73 : vector<8x128xf32>
    %c3_48 = arith.constant 3 : index
    %c0_49 = arith.constant 0 : index
    %c0_50 = arith.constant 0 : index
    %75 = vector.load %arg5[%c3_48, %c0_49, %c0_50] : memref<16x8x128xf32, #tpu.memory_space<vmem>>, vector<1x8x128xf32>
    %76 = vector.shape_cast %75 : vector<1x8x128xf32> to vector<8x128xf32>
    %77 = vector.shape_cast %74 : vector<8x128xf32> to vector<1x8x128xf32>
    tpu.vector_store %arg5[%c3_48, %c0_49, %c0_50], %77 {strides = array<i32>} : memref<16x8x128xf32, #tpu.memory_space<vmem>>, vector<1x8x128xf32>,
    %c4 = arith.constant 4 : index
    %c0_51 = arith.constant 0 : index
    %c0_52 = arith.constant 0 : index
    %78 = vector.load %arg5[%c4, %c0_51, %c0_52] : memref<16x8x128xf32, #tpu.memory_space<vmem>>, vector<1x8x128xf32>
    %79 = vector.shape_cast %78 : vector<1x8x128xf32> to vector<8x128xf32>
    %cst_53 = arith.constant dense<0.000000e+00> : vector<8x128xf32>
    %80 = vector.multi_reduction <add>, %69, %cst_53 [0] : vector<1x8x128xf32> to vector<8x128xf32>
    %81 = arith.addf %79, %80 : vector<8x128xf32>
    %c4_54 = arith.constant 4 : index
    %c0_55 = arith.constant 0 : index
    %c0_56 = arith.constant 0 : index
    %82 = vector.load %arg5[%c4_54, %c0_55, %c0_56] : memref<16x8x128xf32, #tpu.memory_space<vmem>>, vector<1x8x128xf32>
    %83 = vector.shape_cast %82 : vector<1x8x128xf32> to vector<8x128xf32>
    %84 = vector.shape_cast %81 : vector<8x128xf32> to vector<1x8x128xf32>
    tpu.vector_store %arg5[%c4_54, %c0_55, %c0_56], %84 {strides = array<i32>} : memref<16x8x128xf32, #tpu.memory_space<vmem>>, vector<1x8x128xf32>,
    %c5 = arith.constant 5 : index
    %c0_57 = arith.constant 0 : index
    %c0_58 = arith.constant 0 : index
    %85 = vector.load %arg5[%c5, %c0_57, %c0_58] : memref<16x8x128xf32, #tpu.memory_space<vmem>>, vector<1x8x128xf32>
    %86 = vector.shape_cast %85 : vector<1x8x128xf32> to vector<8x128xf32>
    %cst_59 = arith.constant dense<0.000000e+00> : vector<8x128xf32>
    %87 = vector.multi_reduction <add>, %68, %cst_59 [0] : vector<1x8x128xf32> to vector<8x128xf32>
    %88 = arith.addf %86, %87 : vector<8x128xf32>
    %c5_60 = arith.constant 5 : index
    %c0_61 = arith.constant 0 : index
    %c0_62 = arith.constant 0 : index
    %89 = vector.load %arg5[%c5_60, %c0_61, %c0_62] : memref<16x8x128xf32, #tpu.memory_space<vmem>>, vector<1x8x128xf32>
    %90 = vector.shape_cast %89 : vector<1x8x128xf32> to vector<8x128xf32>
    %91 = vector.shape_cast %88 : vector<8x128xf32> to vector<1x8x128xf32>
    tpu.vector_store %arg5[%c5_60, %c0_61, %c0_62], %91 {strides = array<i32>} : memref<16x8x128xf32, #tpu.memory_space<vmem>>, vector<1x8x128xf32>,
    %92 = arith.mulf %12, %68 : vector<1x8x128xf32>
    %93 = arith.subf %64, %92 : vector<1x8x128xf32>
    %c2_i32 = arith.constant 2 : i32
    %94 = vector.broadcast %c2_i32 : i32 to vector<1x8x128xi32>
    %95 = arith.cmpi eq, %4, %94 : vector<1x8x128xi32>
    %96 = arith.extui %95 : vector<1x8x128xi1> to vector<1x8x128xi32>
    %97 = arith.sitofp %96 : vector<1x8x128xi32> to vector<1x8x128xf32>
    %98 = arith.mulf %26, %32 : vector<1x8x128xf32>
    %c6 = arith.constant 6 : index
    %c0_63 = arith.constant 0 : index
    %c0_64 = arith.constant 0 : index
    %99 = vector.load %arg5[%c6, %c0_63, %c0_64] : memref<16x8x128xf32, #tpu.memory_space<vmem>>, vector<1x8x128xf32>
    %100 = vector.shape_cast %99 : vector<1x8x128xf32> to vector<8x128xf32>
    %101 = arith.mulf %98, %97 : vector<1x8x128xf32>
    %cst_65 = arith.constant dense<0.000000e+00> : vector<8x128xf32>
    %102 = vector.multi_reduction <add>, %101, %cst_65 [0] : vector<1x8x128xf32> to vector<8x128xf32>
    %103 = arith.addf %100, %102 : vector<8x128xf32>
    %c6_66 = arith.constant 6 : index
    %c0_67 = arith.constant 0 : index
    %c0_68 = arith.constant 0 : index
    %104 = vector.load %arg5[%c6_66, %c0_67, %c0_68] : memref<16x8x128xf32, #tpu.memory_space<vmem>>, vector<1x8x128xf32>
    %105 = vector.shape_cast %104 : vector<1x8x128xf32> to vector<8x128xf32>
    %106 = vector.shape_cast %103 : vector<8x128xf32> to vector<1x8x128xf32>
    tpu.vector_store %arg5[%c6_66, %c0_67, %c0_68], %106 {strides = array<i32>} : memref<16x8x128xf32, #tpu.memory_space<vmem>>, vector<1x8x128xf32>,
    %c7 = arith.constant 7 : index
    %c0_69 = arith.constant 0 : index
    %c0_70 = arith.constant 0 : index
    %107 = vector.load %arg5[%c7, %c0_69, %c0_70] : memref<16x8x128xf32, #tpu.memory_space<vmem>>, vector<1x8x128xf32>
    %108 = vector.shape_cast %107 : vector<1x8x128xf32> to vector<8x128xf32>
    %cst_71 = arith.constant dense<0.000000e+00> : vector<8x128xf32>
    %109 = vector.multi_reduction <add>, %98, %cst_71 [0] : vector<1x8x128xf32> to vector<8x128xf32>
    %110 = arith.addf %108, %109 : vector<8x128xf32>
    %c7_72 = arith.constant 7 : index
    %c0_73 = arith.constant 0 : index
    %c0_74 = arith.constant 0 : index
    %111 = vector.load %arg5[%c7_72, %c0_73, %c0_74] : memref<16x8x128xf32, #tpu.memory_space<vmem>>, vector<1x8x128xf32>
    %112 = vector.shape_cast %111 : vector<1x8x128xf32> to vector<8x128xf32>
    %113 = vector.shape_cast %110 : vector<8x128xf32> to vector<1x8x128xf32>
    tpu.vector_store %arg5[%c7_72, %c0_73, %c0_74], %113 {strides = array<i32>} : memref<16x8x128xf32, #tpu.memory_space<vmem>>, vector<1x8x128xf32>,
    %c8 = arith.constant 8 : index
    %c0_75 = arith.constant 0 : index
    %c0_76 = arith.constant 0 : index
    %114 = vector.load %arg5[%c8, %c0_75, %c0_76] : memref<16x8x128xf32, #tpu.memory_space<vmem>>, vector<1x8x128xf32>
    %115 = vector.shape_cast %114 : vector<1x8x128xf32> to vector<8x128xf32>
    %cst_77 = arith.constant dense<0.000000e+00> : vector<8x128xf32>
    %116 = vector.multi_reduction <add>, %97, %cst_77 [0] : vector<1x8x128xf32> to vector<8x128xf32>
    %117 = arith.addf %115, %116 : vector<8x128xf32>
    %c8_78 = arith.constant 8 : index
    %c0_79 = arith.constant 0 : index
    %c0_80 = arith.constant 0 : index
    %118 = vector.load %arg5[%c8_78, %c0_79, %c0_80] : memref<16x8x128xf32, #tpu.memory_space<vmem>>, vector<1x8x128xf32>
    %119 = vector.shape_cast %118 : vector<1x8x128xf32> to vector<8x128xf32>
    %120 = vector.shape_cast %117 : vector<8x128xf32> to vector<1x8x128xf32>
    tpu.vector_store %arg5[%c8_78, %c0_79, %c0_80], %120 {strides = array<i32>} : memref<16x8x128xf32, #tpu.memory_space<vmem>>, vector<1x8x128xf32>,
    %121 = arith.mulf %14, %97 : vector<1x8x128xf32>
    %122 = arith.subf %93, %121 : vector<1x8x128xf32>
    %c3_i32 = arith.constant 3 : i32
    %123 = vector.broadcast %c3_i32 : i32 to vector<1x8x128xi32>
    %124 = arith.cmpi eq, %4, %123 : vector<1x8x128xi32>
    %125 = arith.extui %124 : vector<1x8x128xi1> to vector<1x8x128xi32>
    %126 = arith.sitofp %125 : vector<1x8x128xi32> to vector<1x8x128xf32>
    %127 = arith.mulf %29, %32 : vector<1x8x128xf32>
    %c9 = arith.constant 9 : index
    %c0_81 = arith.constant 0 : index
    %c0_82 = arith.constant 0 : index
    %128 = vector.load %arg5[%c9, %c0_81, %c0_82] : memref<16x8x128xf32, #tpu.memory_space<vmem>>, vector<1x8x128xf32>
    %129 = vector.shape_cast %128 : vector<1x8x128xf32> to vector<8x128xf32>
    %130 = arith.mulf %127, %126 : vector<1x8x128xf32>
    %cst_83 = arith.constant dense<0.000000e+00> : vector<8x128xf32>
    %131 = vector.multi_reduction <add>, %130, %cst_83 [0] : vector<1x8x128xf32> to vector<8x128xf32>
    %132 = arith.addf %129, %131 : vector<8x128xf32>
    %c9_84 = arith.constant 9 : index
    %c0_85 = arith.constant 0 : index
    %c0_86 = arith.constant 0 : index
    %133 = vector.load %arg5[%c9_84, %c0_85, %c0_86] : memref<16x8x128xf32, #tpu.memory_space<vmem>>, vector<1x8x128xf32>
    %134 = vector.shape_cast %133 : vector<1x8x128xf32> to vector<8x128xf32>
    %135 = vector.shape_cast %132 : vector<8x128xf32> to vector<1x8x128xf32>
    tpu.vector_store %arg5[%c9_84, %c0_85, %c0_86], %135 {strides = array<i32>} : memref<16x8x128xf32, #tpu.memory_space<vmem>>, vector<1x8x128xf32>,
    %c10 = arith.constant 10 : index
    %c0_87 = arith.constant 0 : index
    %c0_88 = arith.constant 0 : index
    %136 = vector.load %arg5[%c10, %c0_87, %c0_88] : memref<16x8x128xf32, #tpu.memory_space<vmem>>, vector<1x8x128xf32>
    %137 = vector.shape_cast %136 : vector<1x8x128xf32> to vector<8x128xf32>
    %cst_89 = arith.constant dense<0.000000e+00> : vector<8x128xf32>
    %138 = vector.multi_reduction <add>, %127, %cst_89 [0] : vector<1x8x128xf32> to vector<8x128xf32>
    %139 = arith.addf %137, %138 : vector<8x128xf32>
    %c10_90 = arith.constant 10 : index
    %c0_91 = arith.constant 0 : index
    %c0_92 = arith.constant 0 : index
    %140 = vector.load %arg5[%c10_90, %c0_91, %c0_92] : memref<16x8x128xf32, #tpu.memory_space<vmem>>, vector<1x8x128xf32>
    %141 = vector.shape_cast %140 : vector<1x8x128xf32> to vector<8x128xf32>
    %142 = vector.shape_cast %139 : vector<8x128xf32> to vector<1x8x128xf32>
    tpu.vector_store %arg5[%c10_90, %c0_91, %c0_92], %142 {strides = array<i32>} : memref<16x8x128xf32, #tpu.memory_space<vmem>>, vector<1x8x128xf32>,
    %c11 = arith.constant 11 : index
    %c0_93 = arith.constant 0 : index
    %c0_94 = arith.constant 0 : index
    %143 = vector.load %arg5[%c11, %c0_93, %c0_94] : memref<16x8x128xf32, #tpu.memory_space<vmem>>, vector<1x8x128xf32>
    %144 = vector.shape_cast %143 : vector<1x8x128xf32> to vector<8x128xf32>
    %cst_95 = arith.constant dense<0.000000e+00> : vector<8x128xf32>
    %145 = vector.multi_reduction <add>, %126, %cst_95 [0] : vector<1x8x128xf32> to vector<8x128xf32>
    %146 = arith.addf %144, %145 : vector<8x128xf32>
    %c11_96 = arith.constant 11 : index
    %c0_97 = arith.constant 0 : index
    %c0_98 = arith.constant 0 : index
    %147 = vector.load %arg5[%c11_96, %c0_97, %c0_98] : memref<16x8x128xf32, #tpu.memory_space<vmem>>, vector<1x8x128xf32>
    %148 = vector.shape_cast %147 : vector<1x8x128xf32> to vector<8x128xf32>
    %149 = vector.shape_cast %146 : vector<8x128xf32> to vector<1x8x128xf32>
    tpu.vector_store %arg5[%c11_96, %c0_97, %c0_98], %149 {strides = array<i32>} : memref<16x8x128xf32, #tpu.memory_space<vmem>>, vector<1x8x128xf32>,
    %150 = arith.mulf %16, %126 : vector<1x8x128xf32>
    %151 = arith.subf %122, %150 : vector<1x8x128xf32>
    %c12 = arith.constant 12 : index
    %c0_99 = arith.constant 0 : index
    %c0_100 = arith.constant 0 : index
    %152 = vector.load %arg5[%c12, %c0_99, %c0_100] : memref<16x8x128xf32, #tpu.memory_space<vmem>>, vector<1x8x128xf32>
    %153 = vector.shape_cast %152 : vector<1x8x128xf32> to vector<8x128xf32>
    %cst_101 = arith.constant dense<0.000000e+00> : vector<8x128xf32>
    %154 = vector.multi_reduction <add>, %151, %cst_101 [0] : vector<1x8x128xf32> to vector<8x128xf32>
    %155 = arith.addf %153, %154 : vector<8x128xf32>
    %c12_102 = arith.constant 12 : index
    %c0_103 = arith.constant 0 : index
    %c0_104 = arith.constant 0 : index
    %156 = vector.load %arg5[%c12_102, %c0_103, %c0_104] : memref<16x8x128xf32, #tpu.memory_space<vmem>>, vector<1x8x128xf32>
    %157 = vector.shape_cast %156 : vector<1x8x128xf32> to vector<8x128xf32>
    %158 = vector.shape_cast %155 : vector<8x128xf32> to vector<1x8x128xf32>
    tpu.vector_store %arg5[%c12_102, %c0_103, %c0_104], %158 {strides = array<i32>} : memref<16x8x128xf32, #tpu.memory_space<vmem>>, vector<1x8x128xf32>,
    %c0_i32_105 = arith.constant 0 : i32
    %159 = arith.cmpi eq, %arg1, %c0_i32_105 : i32
    %160 = arith.extui %159 : i1 to i32
    %c0_i32_106 = arith.constant 0 : i32
    %161 = arith.cmpi ne, %160, %c0_i32_106 : i32
    scf.if %161 {
      %c0_107 = arith.constant 0 : index
      %c0_108 = arith.constant 0 : index
      %c0_109 = arith.constant 0 : index
      %162 = vector.load %arg5[%c0_107, %c0_108, %c0_109] : memref<16x8x128xf32, #tpu.memory_space<vmem>>, vector<16x8x128xf32>
      %cst_110 = arith.constant dense<0.000000e+00> : vector<16x128xf32>
      %163 = vector.multi_reduction <add>, %162, %cst_110 [1] : vector<16x8x128xf32> to vector<16x128xf32>
      %c0_111 = arith.constant 0 : index
      %c0_112 = arith.constant 0 : index
      %c0_113 = arith.constant 0 : index
      %164 = vector.load %arg4[%c0_111, %c0_112, %c0_113] : memref<1x16x128xf32, #tpu.memory_space<vmem>>, vector<1x16x128xf32>
      %165 = vector.shape_cast %164 : vector<1x16x128xf32> to vector<16x128xf32>
      %166 = vector.shape_cast %163 : vector<16x128xf32> to vector<1x16x128xf32>
      tpu.vector_store %arg4[%c0_111, %c0_112, %c0_113], %166 {strides = array<i32>} : memref<1x16x128xf32, #tpu.memory_space<vmem>>, vector<1x16x128xf32>,
    } else {
    }
    return
  }
  func.func @transform_0(%arg0: i32, %arg1: i32) -> (i32, i32, i32, i32, i32) {
    %c0_i32 = arith.constant 0 : i32
    %c0_i32_0 = arith.constant 0 : i32
    %c0_i32_1 = arith.constant 0 : i32
    %c0_i32_2 = arith.constant 0 : i32
    return %arg0, %c0_i32, %arg1, %c0_i32_0, %c0_i32_1 : i32, i32, i32, i32, i32
  }
  func.func @transform_1(%arg0: i32, %arg1: i32) -> (i32, i32, i32, i32, i32) {
    %c0_i32 = arith.constant 0 : i32
    %c0_i32_0 = arith.constant 0 : i32
    %c0_i32_1 = arith.constant 0 : i32
    %c0_i32_2 = arith.constant 0 : i32
    return %arg0, %c0_i32, %arg1, %c0_i32_0, %c0_i32_1 : i32, i32, i32, i32, i32
  }
  func.func @transform_2(%arg0: i32, %arg1: i32) -> (i32, i32, i32) {
    %c0_i32 = arith.constant 0 : i32
    %c0_i32_0 = arith.constant 0 : i32
    %c0_i32_1 = arith.constant 0 : i32
    return %arg0, %c0_i32, %c0_i32_0 : i32, i32, i32
  }
}

</mosaic_0001>

<llo_original>
// kernel: tpu_custom_call.1
$region0: #{tpu_custom_call.1}
  #allocation0 [shape = 'u32[]', space=smem, size = 0x4, offset = 0x4, fixed_abs, tag = 'smem constant byte address 0x4 - core index']
  #allocation1 [shape = 'u32[144,128]{1,0:T(1,128)}', space=vmem, size = 0x12000, scoped, tag = 'internal scratch']
  #allocation2 [shape = 'f32[16,8,128]{2,1,0:T(8,128)}', space=vmem, size = 0x10000, scoped, tag = 'scratch operand']
  %s0 = inlined_call_operand.hbm [shape: f32[2,4,1,8,128], index: 0, kind: input, shape index: {}]
  %s1 = inlined_call_operand.hbm [shape: s32[2,1,1,8,128], index: 1, kind: input, shape index: {}]
  %s2 = inlined_call_operand.hbm [shape: f32[2,16,128], index: 2, kind: output, shape index: {}]
  %s3 = sld [smem:[#allocation0]]
  $region57: #{tpu_custom_call.1} parent=0
    _
  %s5 = ssub.s32 1, %s3
  %s6 = scalar_select 0, %s5, %s3
  $region1: #{tpu_custom_call.1} parent=0
    #allocation3 [shape = 'u8[32768]{0}', space=vmem, size = 0x8000, scoped, tag = 'input window, operand 0']
    #allocation4 [shape = 's32[2]{0}', space=sflag, size = 0x8, scoped, tag = 'scoped memory for tpu_custom_call.1']
    #allocation5 [shape = 's32[2]{0}', space=sflag, size = 0x8, scoped, tag = 'scoped memory for tpu_custom_call.1']
    #allocation6 [shape = 'u8[8192]{0}', space=vmem, size = 0x2000, scoped, tag = 'input window, operand 1']
    #allocation7 [shape = 's32[2]{0}', space=sflag, size = 0x8, scoped, tag = 'scoped memory for tpu_custom_call.1']
    #allocation8 [shape = 'u8[16384]{0}', space=vmem, size = 0x4000, scoped, tag = 'output window, operand 0']
    %7 = vsyncpa [#allocation4], 0
    %s8 = scalar_lea.sflag [#allocation4], 1
    %9 = vsyncpa %s8, 0
    %10 = vsyncpa [#allocation7], 0
    %s11 = scalar_lea.sflag [#allocation7], 1
    %12 = vsyncpa %s11, 0
    %13 = vsyncpa [#allocation5], 0
    %s14 = scalar_lea.sflag [#allocation5], 1
    %15 = vsyncpa %s14, 0
    loop: start=0, step=1, limit=4
    $region2: #{tpu_custom_call.1} parent=1 // loop_pre_header
      _
    $region3: #{tpu_custom_call.1} parent=1 // loop_header
      %s17 = sphi 0, %s21
      %p18 = scmp.ge.s32.totalorder %s17, 4
      %s24 = sphi 0, %s36
      %s25 = sphi 0, %s32
      %s26 = sphi 0, %s24
      %s27 = sphi 0, %s25
      %s28 = sphi 0, %s26
      %s29 = sphi 0, %s27
      %s41 = sphi 0, %s43
      %s44 = sphi 0, %s41
      %s45 = sphi 0, %s44
      %s61 = sphi 0, %s45
      %s69 = sphi 0, %s71
      %s72 = sphi 0, %s69
      %s73 = sphi 0, %s72
      %s89 = sphi 0, %s73
      %s95 = sphi 0, %s97
      %s98 = sphi 0, %s95
      %s99 = sphi 0, %s98
      %s115 = sphi 0, %s99
    $region4: #{tpu_custom_call.1} parent=1 // loop_header_branch
      %20 = sbr.rel (%p18) target = $region8
    $region5: #{tpu_custom_call.1} parent=1 // loop_body
      %s22 = ssub.s32 %s17, 1
      %s23 = ssub.s32 %s17, 2
      %s30 = sadd.s32 1, %s25
      %p31 = scmp.ge.s32.totalorder %s30, 1
      %s32 = scalar_select %p31, 0, %s30
      %s33 = sadd.s32 1, %s24
      %s34 = scalar_select %p31, %s33, %s24
      %p35 = scmp.ge.s32.totalorder %s34, 2
      %s36 = scalar_select %p35, 0, %s34
      %s37 = ssub.s32 %s24, %s36
      %s38 = ssub.s32 %s25, %s32
      %s39 = sor.u32 %s37, %s38
      %p40 = scmp.eq.s32.totalorder %s39, 0
      %s42 = sadd.s32 %s41, 1
      %s43 = scalar_select %p40, %s41, %s42
      %p46 = pneg %p40
      %p47 = scmp.eq.s32.totalorder %s17, 1
      %p48 = por %p46, %p47
      %p49 = scmp.ne.s32.totalorder %s41, %s44
      %p50 = scmp.eq.s32.totalorder %s17, 0
      %p51 = por %p49, %p50
      %p52 = scmp.ne.s32.totalorder %s41, %s44
      %p53 = scmp.eq.s32.totalorder %s22, 1
      %p54 = por %p52, %p53
      %p55 = scmp.ne.s32.totalorder %s44, %s45
      %p56 = scmp.eq.s32.totalorder %s22, 0
      %p57 = por %p55, %p56
      %p58 = scmp.ne.s32.totalorder %s44, %s45
      %p59 = scmp.eq.s32.totalorder %s23, 1
      %p60 = por %p58, %p59
      %p62 = scmp.ne.s32.totalorder %s45, %s61
      %p63 = scmp.eq.s32.totalorder %s23, 0
      %p64 = por %p62, %p63
      %s65 = ssub.s32 %s24, %s36
      %s66 = ssub.s32 %s25, %s32
      %s67 = sor.u32 %s65, %s66
      %p68 = scmp.eq.s32.totalorder %s67, 0
      %s70 = sadd.s32 %s69, 1
      %s71 = scalar_select %p68, %s69, %s70
      %p74 = pneg %p68
      %p75 = scmp.eq.s32.totalorder %s17, 1
      %p76 = por %p74, %p75
      %p77 = scmp.ne.s32.totalorder %s69, %s72
      %p78 = scmp.eq.s32.totalorder %s17, 0
      %p79 = por %p77, %p78
      %p80 = scmp.ne.s32.totalorder %s69, %s72
      %p81 = scmp.eq.s32.totalorder %s22, 1
      %p82 = por %p80, %p81
      %p83 = scmp.ne.s32.totalorder %s72, %s73
      %p84 = scmp.eq.s32.totalorder %s22, 0
      %p85 = por %p83, %p84
      %p86 = scmp.ne.s32.totalorder %s72, %s73
      %p87 = scmp.eq.s32.totalorder %s23, 1
      %p88 = por %p86, %p87
      %p90 = scmp.ne.s32.totalorder %s73, %s89
      %p91 = scmp.eq.s32.totalorder %s23, 0
      %p92 = por %p90, %p91
      %s93 = ssub.s32 %s24, %s36
      %p94 = scmp.eq.s32.totalorder %s93, 0
      %s96 = sadd.s32 %s95, 1
      %s97 = scalar_select %p94, %s95, %s96
      %p100 = pneg %p94
      %p101 = scmp.eq.s32.totalorder %s17, 1
      %p102 = por %p100, %p101
      %p103 = scmp.ne.s32.totalorder %s95, %s98
      %p104 = scmp.eq.s32.totalorder %s17, 0
      %p105 = por %p103, %p104
      %p106 = scmp.ne.s32.totalorder %s95, %s98
      %p107 = scmp.eq.s32.totalorder %s22, 1
      %p108 = por %p106, %p107
      %p109 = scmp.ne.s32.totalorder %s98, %s99
      %p110 = scmp.eq.s32.totalorder %s22, 0
      %p111 = por %p109, %p110
      %p112 = scmp.ne.s32.totalorder %s98, %s99
      %p113 = scmp.eq.s32.totalorder %s23, 1
      %p114 = por %p112, %p113
      %p116 = scmp.ne.s32.totalorder %s99, %s115
      %p117 = scmp.eq.s32.totalorder %s23, 0
      %p118 = por %p116, %p117
      %p119 = scmp.le.s32.totalorder 1, %s17
      %p120 = scmp.lt.s32.totalorder %s17, 3
      %p121 = pnand %p119, %p120
      %p122 = pneg %p121
      // Predicated region
      $region9: #{tpu_custom_call.1} parent=5 // pred_check
        _
      $region10: #{tpu_custom_call.1} parent=5 // pred_check_branch
        %124 = sbr.rel (%p121) target = $region12
      $region11: #{tpu_custom_call.1} parent=5 // pred_region
        %s125 = ssub.s32 %s17, 1
      $region12: #{tpu_custom_call.1} parent=5 // pred_fallthru
        _
      %p126 = scmp.lt.s32.totalorder %s17, 2
      // Predicated region
      $region13: #{tpu_custom_call.1} parent=5 // pred_check
        %p127 = pneg %p126
      $region14: #{tpu_custom_call.1} parent=5 // pred_check_branch
        %129 = sbr.rel (%p127) target = $region16
      $region15: #{tpu_custom_call.1} parent=5 // pred_region
        // Predicated region
        $region17: #{tpu_custom_call.1} parent=15 // pred_check
          %p130 = pneg %p51
        $region18: #{tpu_custom_call.1} parent=15 // pred_check_branch
          %132 = sbr.rel (%p130) target = $region20
        $region19: #{tpu_custom_call.1} parent=15 // pred_region
          %s133 = sand.u32 %s41, 1
          %s134 = scalar_lea.sflag [#allocation4], %s133
          %s135 = sand.u32 %s41, 1
          %s136 = smul.addr %s135, 32
          %s137 = scalar_lea.vmem [#allocation3], %s136
          %s139 = ssub.s32 512, 512
          %140 = vsyncadd %s134, %s139
          %s141 = smul.addr %s24, 4
          %s142 = sadd.s32 %s25, %s141
          %s143 = smul.addr %s142, 128
          %s144 = scalar_lea.hbm %s0, %s143
          %s145 = sshll.u32 %s137, 4
          %s146 = int_to_ptr.vmem [resolvable:$true] %s145
          %151 = dma.hbm_to_vmem [thread:$0]  %s144, 512, %s146, %s134, 128, 128, 8
        $region20: #{tpu_custom_call.1} parent=15 // pred_fallthru
          _
        // Predicated region
        $region21: #{tpu_custom_call.1} parent=15 // pred_check
          %p152 = pneg %p79
        $region22: #{tpu_custom_call.1} parent=15 // pred_check_branch
          %154 = sbr.rel (%p152) target = $region24
        $region23: #{tpu_custom_call.1} parent=15 // pred_region
          %s155 = sand.u32 %s69, 1
          %s156 = scalar_lea.sflag [#allocation7], %s155
          %s157 = sand.u32 %s69, 1
          %s158 = smul.addr %s157, 8
          %s159 = scalar_lea.vmem [#allocation6], %s158
          %s161 = ssub.s32 128, 128
          %162 = vsyncadd %s156, %s161
          %s163 = sadd.s32 %s25, %s24
          %s164 = smul.addr %s163, 128
          %s165 = scalar_lea.hbm %s1, %s164
          %s167 = sshll.u32 %s159, 4
          %s168 = int_to_ptr.vmem [resolvable:$true] %s167
          %170 = dma.hbm_to_vmem [thread:$0]  %s165, 128, %s168, %s156
        $region24: #{tpu_custom_call.1} parent=15 // pred_fallthru
          _
      $region16: #{tpu_custom_call.1} parent=5 // pred_fallthru
        _
      %p171 = scmp.le.s32.totalorder 1, %s17
      %p172 = scmp.lt.s32.totalorder %s17, 3
      %p173 = pnand %p171, %p172
      %p174 = pneg %p173
      // Predicated region
      $region25: #{tpu_custom_call.1} parent=5 // pred_check
        _
      $region26: #{tpu_custom_call.1} parent=5 // pred_check_branch
        %176 = sbr.rel (%p173) target = $region28
      $region27: #{tpu_custom_call.1} parent=5 // pred_region
        %s177 = ssub.s32 %s17, 1
        %s178 = sand.u32 %s44, 1
        %s179 = scalar_lea.sflag [#allocation4], %s178
        %s180 = sand.u32 %s44, 1
        %s181 = smul.addr %s180, 32
        %s182 = scalar_lea.vmem [#allocation3], %s181
        // Predicated region
        $region29: #{tpu_custom_call.1} parent=27 // pred_check
          %p183 = pneg %p57
        $region30: #{tpu_custom_call.1} parent=27 // pred_check_branch
          %185 = sbr.rel (%p183) target = $region32
        $region31: #{tpu_custom_call.1} parent=27 // pred_region
          %186 = dma.done %s179, 512
        $region32: #{tpu_custom_call.1} parent=27 // pred_fallthru
          _
        %s187 = sand.u32 %s72, 1
        %s188 = scalar_lea.sflag [#allocation7], %s187
        %s189 = sand.u32 %s72, 1
        %s190 = smul.addr %s189, 8
        %s191 = scalar_lea.vmem [#allocation6], %s190
        // Predicated region
        $region33: #{tpu_custom_call.1} parent=27 // pred_check
          %p192 = pneg %p85
        $region34: #{tpu_custom_call.1} parent=27 // pred_check_branch
          %194 = sbr.rel (%p192) target = $region36
        $region35: #{tpu_custom_call.1} parent=27 // pred_region
          %195 = dma.done %s188, 128
        $region36: #{tpu_custom_call.1} parent=27 // pred_fallthru
          _
        %s196 = sand.u32 %s44, 1
        %s197 = scalar_lea.sflag [#allocation4], %s196
        %s198 = sand.u32 %s44, 1
        %s199 = smul.addr %s198, 32
        %s200 = scalar_lea.vmem [#allocation3], %s199
        %p201 = pneg %p57
        %p202 = pneg %p54
        %s203 = sand.u32 %s72, 1
        %s204 = scalar_lea.sflag [#allocation7], %s203
        %s205 = sand.u32 %s72, 1
        %s206 = smul.addr %s205, 8
        %s207 = scalar_lea.vmem [#allocation6], %s206
        %p208 = pneg %p85
        %p209 = pneg %p82
        %p210 = pneg %p111
        %p211 = pneg %p108
        %s212 = sand.u32 %s98, 1
        %s213 = scalar_lea.sflag [#allocation5], %s212
        %s214 = sand.u32 %s98, 1
        %s215 = smul.addr %s214, 16
        %s216 = scalar_lea.vmem [#allocation8], %s215
        %p217 = scmp.eq.s32.totalorder %s27, 0
        // Predicated region
        $region37: #{tpu_custom_call.1} parent=27 // pred_check
          %p218 = pneg %p217
        $region38: #{tpu_custom_call.1} parent=27 // pred_check_branch
          %220 = sbr.rel (%p218) target = $region40
        $region39: #{tpu_custom_call.1} parent=27 // pred_region
          %221 = vst [vmem:[#allocation2] sm:$0xff] 0.0
          %222 = vst [vmem:[#allocation2 + $0x8] sm:$0xff] 0.0
          %223 = vst [vmem:[#allocation2 + $0x10] sm:$0xff] 0.0
          %224 = vst [vmem:[#allocation2 + $0x18] sm:$0xff] 0.0
          %225 = vst [vmem:[#allocation2 + $0x20] sm:$0xff] 0.0
          %226 = vst [vmem:[#allocation2 + $0x28] sm:$0xff] 0.0
          %227 = vst [vmem:[#allocation2 + $0x30] sm:$0xff] 0.0
          %228 = vst [vmem:[#allocation2 + $0x38] sm:$0xff] 0.0
          %229 = vst [vmem:[#allocation2 + $0x40] sm:$0xff] 0.0
          %230 = vst [vmem:[#allocation2 + $0x48] sm:$0xff] 0.0
          %231 = vst [vmem:[#allocation2 + $0x50] sm:$0xff] 0.0
          %232 = vst [vmem:[#allocation2 + $0x58] sm:$0xff] 0.0
          %233 = vst [vmem:[#allocation2 + $0x60] sm:$0xff] 0.0
          %234 = vst [vmem:[#allocation2 + $0x68] sm:$0xff] 0.0
          %235 = vst [vmem:[#allocation2 + $0x70] sm:$0xff] 0.0
          %236 = vst [vmem:[#allocation2 + $0x78] sm:$0xff] 0.0
        $region40: #{tpu_custom_call.1} parent=27 // pred_fallthru
          _
        %v237 = vld [vmem:[%s191] sm:$0xff]
        %vm238 = vcmp.ge.s32.totalorder %v237, 0
        %v239 = vsel %vm238, 1, 0
        %v240 = vcvt.s32.f32 %v239
        %v241 = vld [vmem:[%s182] sm:$0xff]
        %s242 = scalar_lea.vmem %s182, 8 [#allocation3]
        %v243 = vld [vmem:[%s242] sm:$0xff]
        %s244 = scalar_lea.vmem %s182, 16 [#allocation3]
        %v245 = vld [vmem:[%s244] sm:$0xff]
        %s246 = scalar_lea.vmem %s182, 24 [#allocation3]
        %v247 = vld [vmem:[%s246] sm:$0xff]
        %v248 = vmax.f32 %v241, %v243
        %v249 = vmax.f32 %v248, %v245
        %v250 = vmax.f32 %v249, %v247
        %v251 = vsub.f32 %v241, %v250
        %v252 = vmul.f32 %v251, 1.442695
        %v253 = vpow.pop %v252
        %v254 = vsub.f32 %v243, %v250
        %v255 = vmul.f32 %v254, 1.442695
        %v256 = vpow.pop %v255
        %v257 = vadd.f32 %v253, %v256
        %v258 = vsub.f32 %v245, %v250
        %v259 = vmul.f32 %v258, 1.442695
        %v260 = vpow.pop %v259
        %v261 = vadd.f32 %v257, %v260
        %v262 = vsub.f32 %v247, %v250
        %v263 = vmul.f32 %v262, 1.442695
        %v264 = vpow.pop %v263
        %v265 = vadd.f32 %v261, %v264
        %v266 = vrcp.pop %v265
        %v267 = vmul.f32 %v266, %v240
        %v268 = vlog2.pop %v265
        %v269 = vmul.f32 %v268, 0.6931472
        %v270 = vadd.f32 %v250, %v269
        %v271 = vmul.f32 %v240, %v270
        %vm272 = vcmp.eq.s32.totalorder %v237, 0
        %v273 = vsel %vm272, 1, 0
        %v274 = vcvt.s32.f32 %v273
        %v275 = vmul.f32 %v253, %v267
        %v276 = vld [vmem:[#allocation2] sm:$0xff]
        %v277 = vmul.f32 %v275, %v274
        %v278 = vadd.f32 %v277, 0.0
        %v279 = vadd.f32 %v276, %v278
        %280 = vst [vmem:[#allocation2] sm:$0xff] %v279
        %s281 = scalar_lea.vmem [#allocation2], 8
        %v282 = vld [vmem:[%s281] sm:$0xff]
        %v283 = vadd.f32 %v275, 0.0
        %v284 = vadd.f32 %v282, %v283
        %285 = vst [vmem:[%s281] sm:$0xff] %v284
        %s286 = scalar_lea.vmem [#allocation2], 16
        %v287 = vld [vmem:[%s286] sm:$0xff]
        %v288 = vadd.f32 %v274, 0.0
        %v289 = vadd.f32 %v287, %v288
        %290 = vst [vmem:[%s286] sm:$0xff] %v289
        %v291 = vmul.f32 %v241, %v274
        %v292 = vsub.f32 %v271, %v291
        %vm293 = vcmp.eq.s32.totalorder %v237, 1
        %v294 = vsel %vm293, 1, 0
        %v295 = vcvt.s32.f32 %v294
        %v296 = vmul.f32 %v256, %v267
        %s297 = scalar_lea.vmem [#allocation2], 24
        %v298 = vld [vmem:[%s297] sm:$0xff]
        %v299 = vmul.f32 %v296, %v295
        %v300 = vadd.f32 %v299, 0.0
        %v301 = vadd.f32 %v298, %v300
        %302 = vst [vmem:[%s297] sm:$0xff] %v301
        %s303 = scalar_lea.vmem [#allocation2], 32
        %v304 = vld [vmem:[%s303] sm:$0xff]
        %v305 = vadd.f32 %v296, 0.0
        %v306 = vadd.f32 %v304, %v305
        %307 = vst [vmem:[%s303] sm:$0xff] %v306
        %s308 = scalar_lea.vmem [#allocation2], 40
        %v309 = vld [vmem:[%s308] sm:$0xff]
        %v310 = vadd.f32 %v295, 0.0
        %v311 = vadd.f32 %v309, %v310
        %312 = vst [vmem:[%s308] sm:$0xff] %v311
        %v313 = vmul.f32 %v243, %v295
        %v314 = vsub.f32 %v292, %v313
        %vm315 = vcmp.eq.s32.totalorder %v237, 2
        %v316 = vsel %vm315, 1, 0
        %v317 = vcvt.s32.f32 %v316
        %v318 = vmul.f32 %v260, %v267
        %s319 = scalar_lea.vmem [#allocation2], 48
        %v320 = vld [vmem:[%s319] sm:$0xff]
        %v321 = vmul.f32 %v318, %v317
        %v322 = vadd.f32 %v321, 0.0
        %v323 = vadd.f32 %v320, %v322
        %324 = vst [vmem:[%s319] sm:$0xff] %v323
        %s325 = scalar_lea.vmem [#allocation2], 56
        %v326 = vld [vmem:[%s325] sm:$0xff]
        %v327 = vadd.f32 %v318, 0.0
        %v328 = vadd.f32 %v326, %v327
        %329 = vst [vmem:[%s325] sm:$0xff] %v328
        %s330 = scalar_lea.vmem [#allocation2], 64
        %v331 = vld [vmem:[%s330] sm:$0xff]
        %v332 = vadd.f32 %v317, 0.0
        %v333 = vadd.f32 %v331, %v332
        %334 = vst [vmem:[%s330] sm:$0xff] %v333
        %v335 = vmul.f32 %v245, %v317
        %v336 = vsub.f32 %v314, %v335
        %vm337 = vcmp.eq.s32.totalorder %v237, 3
        %v338 = vsel %vm337, 1, 0
        %v339 = vcvt.s32.f32 %v338
        %v340 = vmul.f32 %v264, %v267
        %s341 = scalar_lea.vmem [#allocation2], 72
        %v342 = vld [vmem:[%s341] sm:$0xff]
        %v343 = vmul.f32 %v340, %v339
        %v344 = vadd.f32 %v343, 0.0
        %v345 = vadd.f32 %v342, %v344
        %346 = vst [vmem:[%s341] sm:$0xff] %v345
        %s347 = scalar_lea.vmem [#allocation2], 80
        %v348 = vld [vmem:[%s347] sm:$0xff]
        %v349 = vadd.f32 %v340, 0.0
        %v350 = vadd.f32 %v348, %v349
        %351 = vst [vmem:[%s347] sm:$0xff] %v350
        %s352 = scalar_lea.vmem [#allocation2], 88
        %v353 = vld [vmem:[%s352] sm:$0xff]
        %v354 = vadd.f32 %v339, 0.0
        %v355 = vadd.f32 %v353, %v354
        %356 = vst [vmem:[%s352] sm:$0xff] %v355
        %v357 = vmul.f32 %v247, %v339
        %v358 = vsub.f32 %v336, %v357
        %s359 = scalar_lea.vmem [#allocation2], 96
        %v360 = vld [vmem:[%s359] sm:$0xff]
        %v361 = vadd.f32 %v358, 0.0
        %v362 = vadd.f32 %v360, %v361
        %363 = vst [vmem:[%s359] sm:$0xff] %v362
        // Predicated region
        $region41: #{tpu_custom_call.1} parent=27 // pred_check
          %p364 = pneg %p217
        $region42: #{tpu_custom_call.1} parent=27 // pred_check_branch
          %366 = sbr.rel (%p364) target = $region44
        $region43: #{tpu_custom_call.1} parent=27 // pred_region
          %v367 = vld [vmem:[#allocation2] sm:$0xff]
          %v368 = vld [vmem:[#allocation2 + $0x8] sm:$0xff]
          %v369 = vld [vmem:[#allocation2 + $0x10] sm:$0xff]
          %v370 = vld [vmem:[#allocation2 + $0x18] sm:$0xff]
          %v371 = vld [vmem:[#allocation2 + $0x20] sm:$0xff]
          %v372 = vld [vmem:[#allocation2 + $0x28] sm:$0xff]
          %v373 = vld [vmem:[#allocation2 + $0x30] sm:$0xff]
          %v374 = vld [vmem:[#allocation2 + $0x38] sm:$0xff]
          %v375 = vld [vmem:[#allocation2 + $0x40] sm:$0xff]
          %v376 = vld [vmem:[#allocation2 + $0x48] sm:$0xff]
          %v377 = vld [vmem:[#allocation2 + $0x50] sm:$0xff]
          %v378 = vld [vmem:[#allocation2 + $0x58] sm:$0xff]
          %v379 = vld [vmem:[#allocation2 + $0x60] sm:$0xff]
          %v380 = vld [vmem:[#allocation2 + $0x68] sm:$0xff]
          %v381 = vld [vmem:[#allocation2 + $0x70] sm:$0xff]
          %v382 = vld [vmem:[#allocation2 + $0x78] sm:$0xff]
          %v383 = vrot.slane %v367, 4
          %v384 = vadd.f32 %v367, %v383
          %v385 = vrot.slane %v384, 2
          %v386 = vadd.f32 %v384, %v385
          %v387 = vrot.slane %v386, 1
          %v388 = vadd.f32 %v386, %v387
          %v389 = vrot.slane %v368, 4
          %v390 = vadd.f32 %v368, %v389
          %v391 = vrot.slane %v390, 2
          %v392 = vadd.f32 %v390, %v391
          %v393 = vrot.slane %v392, 1
          %v394 = vadd.f32 %v392, %v393
          %v395 = vrot.slane %v369, 4
          %v396 = vadd.f32 %v369, %v395
          %v397 = vrot.slane %v396, 2
          %v398 = vadd.f32 %v396, %v397
          %v399 = vrot.slane %v398, 1
          %v400 = vadd.f32 %v398, %v399
          %v401 = vrot.slane %v370, 4
          %v402 = vadd.f32 %v370, %v401
          %v403 = vrot.slane %v402, 2
          %v404 = vadd.f32 %v402, %v403
          %v405 = vrot.slane %v404, 1
          %v406 = vadd.f32 %v404, %v405
          %v407 = vrot.slane %v371, 4
          %v408 = vadd.f32 %v371, %v407
          %v409 = vrot.slane %v408, 2
          %v410 = vadd.f32 %v408, %v409
          %v411 = vrot.slane %v410, 1
          %v412 = vadd.f32 %v410, %v411
          %v413 = vrot.slane %v372, 4
          %v414 = vadd.f32 %v372, %v413
          %v415 = vrot.slane %v414, 2
          %v416 = vadd.f32 %v414, %v415
          %v417 = vrot.slane %v416, 1
          %v418 = vadd.f32 %v416, %v417
          %v419 = vrot.slane %v373, 4
          %v420 = vadd.f32 %v373, %v419
          %v421 = vrot.slane %v420, 2
          %v422 = vadd.f32 %v420, %v421
          %v423 = vrot.slane %v422, 1
          %v424 = vadd.f32 %v422, %v423
          %v425 = vrot.slane %v374, 4
          %v426 = vadd.f32 %v374, %v425
          %v427 = vrot.slane %v426, 2
          %v428 = vadd.f32 %v426, %v427
          %v429 = vrot.slane %v428, 1
          %v430 = vadd.f32 %v428, %v429
          %v431 = vrot.slane %v375, 4
          %v432 = vadd.f32 %v375, %v431
          %v433 = vrot.slane %v432, 2
          %v434 = vadd.f32 %v432, %v433
          %v435 = vrot.slane %v434, 1
          %v436 = vadd.f32 %v434, %v435
          %v437 = vrot.slane %v376, 4
          %v438 = vadd.f32 %v376, %v437
          %v439 = vrot.slane %v438, 2
          %v440 = vadd.f32 %v438, %v439
          %v441 = vrot.slane %v440, 1
          %v442 = vadd.f32 %v440, %v441
          %v443 = vrot.slane %v377, 4
          %v444 = vadd.f32 %v377, %v443
          %v445 = vrot.slane %v444, 2
          %v446 = vadd.f32 %v444, %v445
          %v447 = vrot.slane %v446, 1
          %v448 = vadd.f32 %v446, %v447
          %v449 = vrot.slane %v378, 4
          %v450 = vadd.f32 %v378, %v449
          %v451 = vrot.slane %v450, 2
          %v452 = vadd.f32 %v450, %v451
          %v453 = vrot.slane %v452, 1
          %v454 = vadd.f32 %v452, %v453
          %v455 = vrot.slane %v379, 4
          %v456 = vadd.f32 %v379, %v455
          %v457 = vrot.slane %v456, 2
          %v458 = vadd.f32 %v456, %v457
          %v459 = vrot.slane %v458, 1
          %v460 = vadd.f32 %v458, %v459
          %v461 = vrot.slane %v380, 4
          %v462 = vadd.f32 %v380, %v461
          %v463 = vrot.slane %v462, 2
          %v464 = vadd.f32 %v462, %v463
          %v465 = vrot.slane %v464, 1
          %v466 = vadd.f32 %v464, %v465
          %v467 = vrot.slane %v381, 4
          %v468 = vadd.f32 %v381, %v467
          %v469 = vrot.slane %v468, 2
          %v470 = vadd.f32 %v468, %v469
          %v471 = vrot.slane %v470, 1
          %v472 = vadd.f32 %v470, %v471
          %v473 = vrot.slane %v382, 4
          %v474 = vadd.f32 %v382, %v473
          %v475 = vrot.slane %v474, 2
          %v476 = vadd.f32 %v474, %v475
          %v477 = vrot.slane %v476, 1
          %v478 = vadd.f32 %v476, %v477
          %vm495 = vcmask 1041409
          %v496 = vsel %vm495, %v394, %v388
          %vm497 = vcmask 1042434
          %v498 = vsel %vm497, %v400, %v496
          %vm499 = vcmask 1043459
          %v500 = vsel %vm499, %v406, %v498
          %vm501 = vcmask 1044484
          %v502 = vsel %vm501, %v412, %v500
          %vm503 = vcmask 1045509
          %v504 = vsel %vm503, %v418, %v502
          %vm505 = vcmask 1046534
          %v506 = vsel %vm505, %v424, %v504
          %vm507 = vcmask 1047559
          %v508 = vsel %vm507, %v430, %v506
          %v509 = vsel %vm495, %v442, %v436
          %v510 = vsel %vm497, %v448, %v509
          %v511 = vsel %vm499, %v454, %v510
          %v512 = vsel %vm501, %v460, %v511
          %v513 = vsel %vm503, %v466, %v512
          %v514 = vsel %vm505, %v472, %v513
          %v515 = vsel %vm507, %v478, %v514
          %518 = vst [vmem:[%s216] sm:$0xff] %v508
          %519 = vst [vmem:[%s216 + $0x8] sm:$0xff] %v515
        $region44: #{tpu_custom_call.1} parent=27 // pred_fallthru
          _
        %s520 = sand.u32 %s98, 1
        %s521 = scalar_lea.sflag [#allocation5], %s520
        %s522 = sand.u32 %s98, 1
        %s523 = smul.addr %s522, 16
        %s524 = scalar_lea.vmem [#allocation8], %s523
        // Predicated region
        $region45: #{tpu_custom_call.1} parent=27 // pred_check
          %p525 = pneg %p108
        $region46: #{tpu_custom_call.1} parent=27 // pred_check_branch
          %527 = sbr.rel (%p525) target = $region48
        $region47: #{tpu_custom_call.1} parent=27 // pred_region
          %s529 = ssub.s32 256, 256
          %530 = vsyncadd %s521, %s529
          %s531 = smul.addr %s26, 2
          %s532 = smul.addr %s531, 128
          %s533 = scalar_lea.hbm %s2, %s532
          %s534 = sshll.u32 %s524, 4
          %s535 = int_to_ptr.vmem [resolvable:$true] %s534
          %540 = dma.vmem_to_hbm [thread:$0]  %s535, 256, %s533, %s521, 128, 128, 8
        $region48: #{tpu_custom_call.1} parent=27 // pred_fallthru
          _
      $region28: #{tpu_custom_call.1} parent=5 // pred_fallthru
        _
      %p541 = scmp.le.s32.totalorder 2, %s17
      // Predicated region
      $region49: #{tpu_custom_call.1} parent=5 // pred_check
        %p542 = pneg %p541
      $region50: #{tpu_custom_call.1} parent=5 // pred_check_branch
        %544 = sbr.rel (%p542) target = $region52
      $region51: #{tpu_custom_call.1} parent=5 // pred_region
        %s545 = ssub.s32 %s17, 2
        // Predicated region
        $region53: #{tpu_custom_call.1} parent=51 // pred_check
          %p546 = pneg %p114
        $region54: #{tpu_custom_call.1} parent=51 // pred_check_branch
          %548 = sbr.rel (%p546) target = $region56
        $region55: #{tpu_custom_call.1} parent=51 // pred_region
          %s549 = sand.u32 %s99, 1
          %s550 = scalar_lea.sflag [#allocation5], %s549
          %s551 = sand.u32 %s99, 1
          %s552 = smul.addr %s551, 16
          %s553 = scalar_lea.vmem [#allocation8], %s552
          %554 = dma.done %s550, 256
        $region56: #{tpu_custom_call.1} parent=51 // pred_fallthru
          _
      $region52: #{tpu_custom_call.1} parent=5 // pred_fallthru
        _
    $region6: #{tpu_custom_call.1} parent=1 // loop_footer
      %s21 = sadd.s32 1, %s17
    $region7: #{tpu_custom_call.1} parent=1 // loop_footer_branch
      %16 = sbr.rel target = $region3
    $region8: #{tpu_custom_call.1} parent=1 // loop_exit
      _
    %555 = vsyncpa [#allocation4], 1
    %s556 = scalar_lea.sflag [#allocation4], 1
    %557 = vsyncpa %s556, 1
    %558 = vsyncpa [#allocation7], 1
    %s559 = scalar_lea.sflag [#allocation7], 1
    %560 = vsyncpa %s559, 1
    %561 = vsyncpa [#allocation5], 1
    %s562 = scalar_lea.sflag [#allocation5], 1
    %563 = vsyncpa %s562, 1

</llo_original>
